<compile_context>
chip_gen: v6e
topology: v6e:2x2x1
jax: 0.10.0
libtpu: 0.0.40
codegen_flags: <defaults>
</compile_context>

<pallas_src>
import functools

import numpy as np
import jax
import jax.numpy as jnp
from jax.experimental import pallas as pl
from jax.experimental.pallas import tpu as pltpu


# Tile caps sized so all live (M_tile, N_tile) f32 temporaries stay well under
# the default scoped-VMEM on every generation (v5e 16 MiB / v6e 32 / v7x 32).
_N_TILE_MAX = 2048   # detections (lane axis), multiple of 128
_M_TILE_MAX = 256    # ground truths (sublane axis), multiple of 8


# ----------------------------------------------------------------------------
# Pallas kernel: pairwise intersection + packed-key masking + OR-reduce
# ----------------------------------------------------------------------------
def _iou_match_kernel(det_box_ref, det_area_ref, det_key_ref,
                      gt_box_ref, gt_area_ref, gt_key_ref,
                      tp_ref, *, iou_threshold):
    # det_box_ref : (4, N_tile) f32   (x1, y1, x2+1, y2+1)  -- expansion hoisted
    # det_area_ref: (1, N_tile) f32   det_key_ref: (1, N_tile) i32
    # gt_box_ref  : (M_tile, 4) f32   gt_area_ref: (M_tile, 1) f32
    # gt_key_ref  : (M_tile, 1) i32
    # tp_ref      : (1, N_tile) f32   output-resident accumulator across GT tiles

    @pl.when(pl.program_id(1) == 0)
    def _():
        tp_ref[...] = jnp.zeros_like(tp_ref)

    dx1 = det_box_ref[0:1, :]
    dy1 = det_box_ref[1:2, :]
    dx2 = det_box_ref[2:3, :]
    dy2 = det_box_ref[3:4, :]

    gx1 = gt_box_ref[:, 0:1]
    gy1 = gt_box_ref[:, 1:2]
    gx2 = gt_box_ref[:, 2:3]
    gy2 = gt_box_ref[:, 3:4]

    # Broadcast (M_tile, 1) op (1, N_tile) -> (M_tile, N_tile)
    iw = jnp.maximum(jnp.minimum(gx2, dx2) - jnp.maximum(gx1, dx1), 0.0)
    ih = jnp.maximum(jnp.minimum(gy2, dy2) - jnp.maximum(gy1, dy1), 0.0)
    inter = iw * ih
    union = det_area_ref[...] + gt_area_ref[...] - inter

    # Divide-free IoU threshold (union > 0 for all real pairs thanks to the +1
    # expansion); padded entries are rejected by the key compare.
    match = (inter >= iou_threshold * union) & (det_key_ref[...] == gt_key_ref[...])

    tp_tile = jnp.max(match.astype(jnp.float32), axis=0, keepdims=True)  # (1, N_tile)
    tp_ref[...] = jnp.maximum(tp_ref[...], tp_tile)


@functools.lru_cache(maxsize=None)
def _build_tp_fn(n_pad, m_pad, n_tile, m_tile, iou_threshold):
    grid = (n_pad // n_tile, m_pad // m_tile)  # (parallel N, reduction M last)
    call = pl.pallas_call(
        functools.partial(_iou_match_kernel, iou_threshold=iou_threshold),
        out_shape=jax.ShapeDtypeStruct((1, n_pad), jnp.float32),
        grid_spec=pltpu.PrefetchScalarGridSpec(
            num_scalar_prefetch=0,
            grid=grid,
            in_specs=[
                pl.BlockSpec((4, n_tile), lambda i, j: (0, i)),       # det boxes
                pl.BlockSpec((1, n_tile), lambda i, j: (0, i)),       # det areas
                pl.BlockSpec((1, n_tile), lambda i, j: (0, i)),       # det keys
                pl.BlockSpec((m_tile, 4), lambda i, j: (j, 0)),       # gt boxes
                pl.BlockSpec((m_tile, 1), lambda i, j: (j, 0)),       # gt areas
                pl.BlockSpec((m_tile, 1), lambda i, j: (j, 0)),       # gt keys
            ],
            # Same block across j -> output stays resident in VMEM (accumulator).
            out_specs=pl.BlockSpec((1, n_tile), lambda i, j: (0, i)),
        ),
        compiler_params=pltpu.CompilerParams(
            dimension_semantics=("parallel", "arbitrary"),
            vmem_limit_bytes=32 * 1024 * 1024,
        ),
    )
    return jax.jit(call)


def _pad_and_tile(n, align, tile_max):
    n_pad = max(align, ((n + align - 1) // align) * align)
    if n_pad > tile_max:
        tile = tile_max
        n_pad = ((n_pad + tile - 1) // tile) * tile
    else:
        tile = n_pad
    return n_pad, tile


def compute_tp_pallas(det_boxes, det_img, det_cls,
                      gt_boxes, gt_img, gt_cls, iou_threshold):
    """Per-detection TP flags (1.0 / 0.0) in the original detection order."""
    det_boxes = np.asarray(det_boxes, np.float32).reshape(-1, 4)
    gt_boxes = np.asarray(gt_boxes, np.float32).reshape(-1, 4)
    det_img = np.asarray(det_img, np.int64).reshape(-1)
    det_cls = np.asarray(det_cls, np.int64).reshape(-1)
    gt_img = np.asarray(gt_img, np.int64).reshape(-1)
    gt_cls = np.asarray(gt_cls, np.int64).reshape(-1)

    n, m = det_boxes.shape[0], gt_boxes.shape[0]

    # Pack (image_id, class_id) into one non-negative int32 key.
    if n + m:
        all_cls = np.concatenate([det_cls, gt_cls])
        all_img = np.concatenate([det_img, gt_img])
        cls_min = int(all_cls.min())
        img_min = int(all_img.min())
        cls_stride = int(all_cls.max()) - cls_min + 1
    else:
        cls_min, img_min, cls_stride = 0, 0, 1
    det_key64 = (det_img - img_min) * cls_stride + (det_cls - cls_min)
    gt_key64 = (gt_img - img_min) * cls_stride + (gt_cls - cls_min)
    if det_key64.size or gt_key64.size:
        assert int(max(det_key64.max(initial=0), gt_key64.max(initial=0))) < 2 ** 31

    n_pad, n_tile = _pad_and_tile(n, 128, _N_TILE_MAX)
    m_pad, m_tile = _pad_and_tile(m, 8, _M_TILE_MAX)

    # Host-side (NumPy) padding: no per-call chain of device .at[].set ops.
    det_coord = np.zeros((4, n_pad), np.float32)
    det_area = np.zeros((1, n_pad), np.float32)
    det_key = np.full((1, n_pad), -1, np.int32)      # never matches any GT key
    if n:
        dx1, dy1 = det_boxes[:, 0], det_boxes[:, 1]
        dx2, dy2 = det_boxes[:, 2] + 1.0, det_boxes[:, 3] + 1.0   # +1 expansion hoisted
        det_coord[:, :n] = np.stack([dx1, dy1, dx2, dy2])
        det_area[0, :n] = (dx2 - dx1) * (dy2 - dy1)
        det_key[0, :n] = det_key64.astype(np.int32)

    gt_coord = np.zeros((m_pad, 4), np.float32)
    gt_area = np.zeros((m_pad, 1), np.float32)
    gt_key = np.full((m_pad, 1), -2, np.int32)       # never matches any detection key
    if m:
        gx1, gy1 = gt_boxes[:, 0], gt_boxes[:, 1]
        gx2, gy2 = gt_boxes[:, 2] + 1.0, gt_boxes[:, 3] + 1.0
        gt_coord[:m, :] = np.stack([gx1, gy1, gx2, gy2], axis=1)
        gt_area[:m, 0] = (gx2 - gx1) * (gy2 - gy1)
        gt_key[:m, 0] = gt_key64.astype(np.int32)

    fn = _build_tp_fn(n_pad, m_pad, n_tile, m_tile, float(iou_threshold))
    tp = fn(det_coord, det_area, det_key, gt_coord, gt_area, gt_key)
    # Host transfer is required: the per-class cumsum/AP glue below is host-side.
    return np.asarray(tp)[0, :n]


# ----------------------------------------------------------------------------
# Host-side glue replicating MeanAveragePrecision.forward bookkeeping
# ----------------------------------------------------------------------------
def every_points_interpolated_AP(recalls, precisions):
    """Identical to the PyTorch reference implementation."""
    mrecalls = [0.0] + list(recalls) + [1.0]
    mprecisions = [0.0] + list(precisions) + [0.0]
    for i in range(len(mprecisions) - 1, 0, -1):
        mprecisions[i - 1] = max(mprecisions[i - 1], mprecisions[i])
    average_precision = 0.0
    for i in range(1, len(mrecalls)):
        if mrecalls[i] != mrecalls[i - 1]:
            average_precision += (mrecalls[i] - mrecalls[i - 1]) * mprecisions[i]
    return average_precision, mrecalls[0:-1], mprecisions[0:-1]


class MeanAveragePrecisionPallas:
    """Pallas-backed MeanAveragePrecision (every-point interpolation)."""

    def __init__(self, classes, iou_threshold=0.5, method="every_point_interpolation"):
        self.classes = {class_id: class_name for class_name, class_id in classes.items()}
        self.iou_threshold = iou_threshold
        self.method = method
        if method != "every_point_interpolation":
            raise RuntimeError("Interpolation Method is Wrong.")

    def __call__(self, detections, ground_truths):
        det_img = [d[0] for d in detections]
        det_cls = [d[1] for d in detections]
        det_score = [d[2] for d in detections]
        det_boxes = [d[3] for d in detections]
        gt_img = [g[0] for g in ground_truths]
        gt_cls = [g[1] for g in ground_truths]
        gt_boxes = [g[3] for g in ground_truths]

        tp_all = compute_tp_pallas(
            np.asarray(det_boxes, np.float32).reshape(-1, 4), det_img, det_cls,
            np.asarray(gt_boxes, np.float32).reshape(-1, 4), gt_img, gt_cls,
            self.iou_threshold)

        results = []
        class_indices = sorted(map(int, self.classes.keys()))
        for class_id in class_indices:
            idx = [i for i in range(len(detections)) if int(det_cls[i]) == class_id]
            idx = sorted(idx, key=lambda i: det_score[i], reverse=True)  # stable, like reference
            num_detections = len(idx)
            num_groundtruths = sum(1 for c in gt_cls if int(c) == class_id)

            TP = [int(tp_all[i]) for i in idx]
            FP = [1 - t for t in TP]
            cumulative_TP = np.cumsum(TP)
            cumulative_FP = np.cumsum(FP)
            if num_groundtruths > 0:
                precisions = np.divide(cumulative_TP, cumulative_FP + cumulative_TP).tolist()
                recalls = (cumulative_TP / num_groundtruths).tolist()
            else:
                precisions, recalls = [0] * num_detections, [0] * num_detections

            ap, mrec, mprec = every_points_interpolated_AP(recalls, precisions)
            if num_groundtruths == 0 and num_detections == 0:
                ap = 1.0

            results.append({
                "average_precision": ap,
                "class_name": self.classes[class_id],
                "recalls": recalls,
                "precisions": precisions,
                "interpolated_recalls": mrec,
                "interpolated_precisions": mprec,
                "total_detections": num_detections,
                "total_groundtruths": num_groundtruths,
                "total_TP": int(sum(TP)),
                "total_FP": int(sum(FP)),
            })

        aps = [r["average_precision"] for r in results]
        mean_ap = sum(aps) / len(aps) if aps else 0.0
        # TODO(synk): the PyTorch reference computes mAP *before* appending any APs
        # (and only appends when print_detail_mAP=True), so its forward() literally
        # always returns 0.0; we return the intended mean of per-class APs instead.
        return mean_ap, results


# ----------------------------------------------------------------------------
# Pure NumPy reference (for validation of the Pallas path)
# ----------------------------------------------------------------------------
def _iou_np(a, b):
    ax1, ay1, ax2, ay2 = a[0], a[1], a[2] + 1.0, a[3] + 1.0
    bx1, by1, bx2, by2 = b[0], b[1], b[2] + 1.0, b[3] + 1.0
    iw = max(0.0, min(ax2, bx2) - max(ax1, bx1))
    ih = max(0.0, min(ay2, by2) - max(ay1, by1))
    inter = iw * ih
    if inter <= 0.0:
        return 0.0
    union = (ax2 - ax1) * (ay2 - ay1) + (bx2 - bx1) * (by2 - by1) - inter
    return inter / union


def reference_map(detections, ground_truths, classes, iou_threshold):
    id2name = {cid: name for name, cid in classes.items()}
    aps = []
    for cid in sorted(id2name.keys()):
        cdets = [d for d in detections if d[1] == cid]
        cgts = [g for g in ground_truths if g[1] == cid]
        n_det, n_gt = len(cdets), len(cgts)
        TP, FP = [0] * n_det, [0] * n_det
        cdets = sorted(cdets, key=lambda d: d[2], reverse=True)
        for i, det in enumerate(cdets):
            img_gts = [g for g in cgts if g[0] == det[0]]
            iou_max = 0.0
            for g in img_gts:
                iou = _iou_np(det[3], g[3])
                if iou > iou_max:
                    iou_max = iou
            if iou_max >= iou_threshold:
                TP[i] = 1  # reference never flags GTs as used ("==" bug) -> always TP here
            else:
                FP[i] = 1
        cum_tp, cum_fp = np.cumsum(TP), np.cumsum(FP)
        if n_gt > 0:
            precisions = np.divide(cum_tp, cum_fp + cum_tp).tolist()
            recalls = (cum_tp / n_gt).tolist()
        else:
            precisions, recalls = [0] * n_det, [0] * n_det
        ap, _, _ = every_points_interpolated_AP(recalls, precisions)
        if n_gt == 0 and n_det == 0:
            ap = 1.0
        aps.append(ap)
    return (sum(aps) / len(aps) if aps else 0.0), aps


# ----------------------------------------------------------------------------
# Example / test
# ----------------------------------------------------------------------------
if __name__ == "__main__":
    key = jax.random.PRNGKey(0)
    classes = {"cat": 0, "dog": 1, "bird": 2}
    num_images, gts_per_img, fps_per_img = 2, 3, 2

    k1, k2, k3, k4, k5, k6, k7, k8, k9 = jax.random.split(key, 9)
    xy = jnp.round(jax.random.uniform(k1, (num_images, gts_per_img, 2), minval=0.0, maxval=60.0))
    wh = jnp.round(jax.random.uniform(k2, (num_images, gts_per_img, 2), minval=8.0, maxval=32.0))
    labels = jax.random.randint(k3, (num_images, gts_per_img), 0, 3)
    jitter = jnp.round(jax.random.uniform(k4, (num_images, gts_per_img, 4), minval=-3.0, maxval=3.0))
    scores = jax.random.uniform(k5, (num_images, gts_per_img), minval=0.5, maxval=1.0)
    fp_xy = jnp.round(jax.random.uniform(k6, (num_images, fps_per_img, 2), minval=0.0, maxval=70.0))
    fp_wh = jnp.round(jax.random.uniform(k7, (num_images, fps_per_img, 2), minval=5.0, maxval=20.0))
    fp_lbl = jax.random.randint(k8, (num_images, fps_per_img), 0, 3)
    fp_sc = jax.random.uniform(k9, (num_images, fps_per_img), minval=0.1, maxval=0.6)

    xy, wh, labels = np.asarray(xy), np.asarray(wh), np.asarray(labels)
    jitter, scores = np.asarray(jitter), np.asarray(scores)
    fp_xy, fp_wh = np.asarray(fp_xy), np.asarray(fp_wh)
    fp_lbl, fp_sc = np.asarray(fp_lbl), np.asarray(fp_sc)

    ground_truths, detections = [], []
    for img in range(num_images):
        path = f"img_{img}.jpg"
        for j in range(gts_per_img):
            x1, y1 = float(xy[img, j, 0]), float(xy[img, j, 1])
            x2, y2 = x1 + float(wh[img, j, 0]), y1 + float(wh[img, j, 1])
            cid = int(labels[img, j])
            ground_truths.append([img, cid, 1, [x1, y1, x2, y2], path])
            dx1 = x1 + float(jitter[img, j, 0]); dy1 = y1 + float(jitter[img, j, 1])
            dx2 = x2 + float(jitter[img, j, 2]); dy2 = y2 + float(jitter[img, j, 3])
            detections.append([img, cid, float(scores[img, j]),
                               [min(dx1, dx2), min(dy1, dy2), max(dx1, dx2), max(dy1, dy2)], path])
        for j in range(fps_per_img):
            x1, y1 = float(fp_xy[img, j, 0]), float(fp_xy[img, j, 1])
            x2, y2 = x1 + float(fp_wh[img, j, 0]), y1 + float(fp_wh[img, j, 1])
            detections.append([img, int(fp_lbl[img, j]), float(fp_sc[img, j]),
                               [x1, y1, x2, y2], path])

    # Run the Pallas-backed metric.
    metric = MeanAveragePrecisionPallas(classes, iou_threshold=0.5)
    mean_ap, results = metric(detections, ground_truths)

    # Validate the kernel TP vector against a direct NumPy computation.
    tp_kernel = compute_tp_pallas(
        np.asarray([d[3] for d in detections], np.float32),
        [d[0] for d in detections], [d[1] for d in detections],
        np.asarray([g[3] for g in ground_truths], np.float32),
        [g[0] for g in ground_truths], [g[1] for g in ground_truths], 0.5)
    tp_kernel = jax.block_until_ready(jnp.asarray(tp_kernel))
    tp_kernel = np.asarray(tp_kernel)
    tp_ref = []
    for d in detections:
        best = 0.0
        for g in ground_truths:
            if g[0] == d[0] and g[1] == d[1]:
                best = max(best, _iou_np(d[3], g[3]))
        tp_ref.append(1.0 if best >= 0.5 else 0.0)
    assert np.array_equal(tp_kernel.astype(np.float64), np.asarray(tp_ref)), "TP mismatch"

    # Validate per-class APs / mAP against the pure-Python reference semantics.
    ref_mean_ap, ref_aps = reference_map(detections, ground_truths, classes, 0.5)
    got_aps = [r["average_precision"] for r in results]
    assert np.allclose(got_aps, ref_aps, atol=1e-6), (got_aps, ref_aps)
    assert np.allclose(mean_ap, ref_mean_ap, atol=1e-6), (mean_ap, ref_mean_ap)

    print("KERNEL_OK")
</pallas_src>

<mosaic_0001>
module attributes {stable_mosaic.version = 11 : i64} {
  func.func @_iou_match_kernel(%arg0: i32, %arg1: i32, %arg2: memref<4x128xf32, #tpu.memory_space<vmem>>, %arg3: memref<1x128xf32, #tpu.memory_space<vmem>>, %arg4: memref<1x128xi32, #tpu.memory_space<vmem>>, %arg5: memref<8x4xf32, #tpu.memory_space<vmem>>, %arg6: memref<8x1xf32, #tpu.memory_space<vmem>>, %arg7: memref<8x1xi32, #tpu.memory_space<vmem>>, %arg8: memref<1x128xf32, #tpu.memory_space<vmem>>) attributes {dimension_semantics = [#tpu.dimension_semantics<parallel>, #tpu.dimension_semantics<arbitrary>], iteration_bounds = array<i64: 1, 1>, scalar_prefetch = 0 : i64, scratch_operands = 0 : i64, tpu.core_type = #tpu.core_type<tc>, window_params = [{transform_indices = @transform_0, window_bounds = array<i64: 4, 128>}, {transform_indices = @transform_1, window_bounds = array<i64: 1, 128>}, {transform_indices = @transform_2, window_bounds = array<i64: 1, 128>}, {transform_indices = @transform_3, window_bounds = array<i64: 8, 4>}, {transform_indices = @transform_4, window_bounds = array<i64: 8, 1>}, {transform_indices = @transform_5, window_bounds = array<i64: 8, 1>}, {transform_indices = @transform_6, window_bounds = array<i64: 1, 128>}]} {
    %c0_i32 = arith.constant 0 : i32
    %0 = arith.cmpi eq, %arg1, %c0_i32 : i32
    %1 = arith.extui %0 : i1 to i32
    %c0_i32_0 = arith.constant 0 : i32
    %2 = arith.cmpi ne, %1, %c0_i32_0 : i32
    scf.if %2 {
      %cst_28 = arith.constant 0.000000e+00 : f32
      %52 = vector.broadcast %cst_28 : f32 to vector<1x128xf32>
      %c0_29 = arith.constant 0 : index
      %c0_30 = arith.constant 0 : index
      %53 = vector.load %arg8[%c0_29, %c0_30] : memref<1x128xf32, #tpu.memory_space<vmem>>, vector<1x128xf32>
      tpu.vector_store %arg8[%c0_29, %c0_30], %52 {strides = array<i32>} : memref<1x128xf32, #tpu.memory_space<vmem>>, vector<1x128xf32>,
    } else {
    }
    %c0 = arith.constant 0 : index
    %c0_1 = arith.constant 0 : index
    %3 = vector.load %arg2[%c0, %c0_1] : memref<4x128xf32, #tpu.memory_space<vmem>>, vector<1x128xf32>
    %c1 = arith.constant 1 : index
    %c0_2 = arith.constant 0 : index
    %4 = vector.load %arg2[%c1, %c0_2] : memref<4x128xf32, #tpu.memory_space<vmem>>, vector<1x128xf32>
    %c2 = arith.constant 2 : index
    %c0_3 = arith.constant 0 : index
    %5 = vector.load %arg2[%c2, %c0_3] : memref<4x128xf32, #tpu.memory_space<vmem>>, vector<1x128xf32>
    %c3 = arith.constant 3 : index
    %c0_4 = arith.constant 0 : index
    %6 = vector.load %arg2[%c3, %c0_4] : memref<4x128xf32, #tpu.memory_space<vmem>>, vector<1x128xf32>
    %c0_5 = arith.constant 0 : index
    %c0_6 = arith.constant 0 : index
    %7 = vector.load %arg5[%c0_5, %c0_6] : memref<8x4xf32, #tpu.memory_space<vmem>>, vector<8x1xf32>
    %c0_7 = arith.constant 0 : index
    %c1_8 = arith.constant 1 : index
    %8 = vector.load %arg5[%c0_7, %c1_8] : memref<8x4xf32, #tpu.memory_space<vmem>>, vector<8x1xf32>
    %c0_9 = arith.constant 0 : index
    %c2_10 = arith.constant 2 : index
    %9 = vector.load %arg5[%c0_9, %c2_10] : memref<8x4xf32, #tpu.memory_space<vmem>>, vector<8x1xf32>
    %c0_11 = arith.constant 0 : index
    %c3_12 = arith.constant 3 : index
    %10 = vector.load %arg5[%c0_11, %c3_12] : memref<8x4xf32, #tpu.memory_space<vmem>>, vector<8x1xf32>
    %11 = vector.broadcast %9 : vector<8x1xf32> to vector<8x128xf32>
    %12 = vector.broadcast %5 : vector<1x128xf32> to vector<8x128xf32>
    %13 = arith.minimumf %11, %12 : vector<8x128xf32>
    %14 = vector.broadcast %7 : vector<8x1xf32> to vector<8x128xf32>
    %15 = vector.broadcast %3 : vector<1x128xf32> to vector<8x128xf32>
    %16 = arith.maximumf %14, %15 : vector<8x128xf32>
    %17 = arith.subf %13, %16 : vector<8x128xf32>
    %cst = arith.constant 0.000000e+00 : f32
    %18 = vector.broadcast %cst : f32 to vector<8x128xf32>
    %19 = arith.maximumf %17, %18 : vector<8x128xf32>
    %20 = vector.broadcast %10 : vector<8x1xf32> to vector<8x128xf32>
    %21 = vector.broadcast %6 : vector<1x128xf32> to vector<8x128xf32>
    %22 = arith.minimumf %20, %21 : vector<8x128xf32>
    %23 = vector.broadcast %8 : vector<8x1xf32> to vector<8x128xf32>
    %24 = vector.broadcast %4 : vector<1x128xf32> to vector<8x128xf32>
    %25 = arith.maximumf %23, %24 : vector<8x128xf32>
    %26 = arith.subf %22, %25 : vector<8x128xf32>
    %cst_13 = arith.constant 0.000000e+00 : f32
    %27 = vector.broadcast %cst_13 : f32 to vector<8x128xf32>
    %28 = arith.maximumf %26, %27 : vector<8x128xf32>
    %29 = arith.mulf %19, %28 : vector<8x128xf32>
    %c0_14 = arith.constant 0 : index
    %c0_15 = arith.constant 0 : index
    %30 = vector.load %arg3[%c0_14, %c0_15] : memref<1x128xf32, #tpu.memory_space<vmem>>, vector<1x128xf32>
    %c0_16 = arith.constant 0 : index
    %c0_17 = arith.constant 0 : index
    %31 = vector.load %arg6[%c0_16, %c0_17] : memref<8x1xf32, #tpu.memory_space<vmem>>, vector<8x1xf32>
    %32 = vector.broadcast %30 : vector<1x128xf32> to vector<8x128xf32>
    %33 = vector.broadcast %31 : vector<8x1xf32> to vector<8x128xf32>
    %34 = arith.addf %32, %33 : vector<8x128xf32>
    %35 = arith.subf %34, %29 : vector<8x128xf32>
    %cst_18 = arith.constant 5.000000e-01 : f32
    %36 = vector.broadcast %cst_18 : f32 to vector<8x128xf32>
    %37 = arith.mulf %36, %35 : vector<8x128xf32>
    %38 = arith.cmpf oge, %29, %37 : vector<8x128xf32>
    %c0_19 = arith.constant 0 : index
    %c0_20 = arith.constant 0 : index
    %39 = vector.load %arg4[%c0_19, %c0_20] : memref<1x128xi32, #tpu.memory_space<vmem>>, vector<1x128xi32>
    %c0_21 = arith.constant 0 : index
    %c0_22 = arith.constant 0 : index
    %40 = vector.load %arg7[%c0_21, %c0_22] : memref<8x1xi32, #tpu.memory_space<vmem>>, vector<8x1xi32>
    %41 = vector.broadcast %39 : vector<1x128xi32> to vector<8x128xi32>
    %42 = vector.broadcast %40 : vector<8x1xi32> to vector<8x128xi32>
    %43 = arith.cmpi eq, %41, %42 : vector<8x128xi32>
    %44 = arith.andi %38, %43 : vector<8x128xi1>
    %45 = arith.extui %44 : vector<8x128xi1> to vector<8x128xi32>
    %46 = arith.sitofp %45 : vector<8x128xi32> to vector<8x128xf32>
    %cst_23 = arith.constant dense<0xFF800000> : vector<128xf32>
    %47 = vector.multi_reduction <maximumf>, %46, %cst_23 [0] : vector<8x128xf32> to vector<128xf32>
    %48 = vector.shape_cast %47 : vector<128xf32> to vector<1x128xf32>
    %c0_24 = arith.constant 0 : index
    %c0_25 = arith.constant 0 : index
    %49 = vector.load %arg8[%c0_24, %c0_25] : memref<1x128xf32, #tpu.memory_space<vmem>>, vector<1x128xf32>
    %50 = arith.maximumf %49, %48 : vector<1x128xf32>
    %c0_26 = arith.constant 0 : index
    %c0_27 = arith.constant 0 : index
    %51 = vector.load %arg8[%c0_26, %c0_27] : memref<1x128xf32, #tpu.memory_space<vmem>>, vector<1x128xf32>
    tpu.vector_store %arg8[%c0_26, %c0_27], %50 {strides = array<i32>} : memref<1x128xf32, #tpu.memory_space<vmem>>, vector<1x128xf32>,
    return
  }
  func.func @transform_0(%arg0: i32, %arg1: i32) -> (i32, i32) {
    %c0_i32 = arith.constant 0 : i32
    %c0_i32_0 = arith.constant 0 : i32
    return %c0_i32, %arg0 : i32, i32
  }
  func.func @transform_1(%arg0: i32, %arg1: i32) -> (i32, i32) {
    %c0_i32 = arith.constant 0 : i32
    %c0_i32_0 = arith.constant 0 : i32
    return %c0_i32, %arg0 : i32, i32
  }
  func.func @transform_2(%arg0: i32, %arg1: i32) -> (i32, i32) {
    %c0_i32 = arith.constant 0 : i32
    %c0_i32_0 = arith.constant 0 : i32
    return %c0_i32, %arg0 : i32, i32
  }
  func.func @transform_3(%arg0: i32, %arg1: i32) -> (i32, i32) {
    %c0_i32 = arith.constant 0 : i32
    %c0_i32_0 = arith.constant 0 : i32
    return %arg1, %c0_i32 : i32, i32
  }
  func.func @transform_4(%arg0: i32, %arg1: i32) -> (i32, i32) {
    %c0_i32 = arith.constant 0 : i32
    %c0_i32_0 = arith.constant 0 : i32
    return %arg1, %c0_i32 : i32, i32
  }
  func.func @transform_5(%arg0: i32, %arg1: i32) -> (i32, i32) {
    %c0_i32 = arith.constant 0 : i32
    %c0_i32_0 = arith.constant 0 : i32
    return %arg1, %c0_i32 : i32, i32
  }
  func.func @transform_6(%arg0: i32, %arg1: i32) -> (i32, i32) {
    %c0_i32 = arith.constant 0 : i32
    %c0_i32_0 = arith.constant 0 : i32
    return %c0_i32, %arg0 : i32, i32
  }
}

</mosaic_0001>

<llo_original>
// kernel: tpu_custom_call.1
$region0: #{tpu_custom_call.1}
  #allocation0 [shape = 'u32[]', space=smem, size = 0x4, offset = 0x4, fixed_abs, tag = 'smem constant byte address 0x4 - core index']
  #allocation1 [shape = 'u32[144,128]{1,0:T(1,128)}', space=vmem, size = 0x12000, scoped, tag = 'internal scratch']
  %s0 = inlined_call_operand.vmem [shape: f32[4,128], index: 0, kind: input, shape index: {}]
  %s1 = inlined_call_operand.vmem [shape: f32[1,128], index: 1, kind: input, shape index: {}]
  %s2 = inlined_call_operand.vmem [shape: s32[1,128], index: 2, kind: input, shape index: {}]
  %s3 = inlined_call_operand.vmem [shape: f32[8,4], index: 3, kind: input, shape index: {}]
  %s4 = inlined_call_operand.vmem [shape: f32[8,1], index: 4, kind: input, shape index: {}]
  %s5 = inlined_call_operand.vmem [shape: s32[8,1], index: 5, kind: input, shape index: {}]
  %s6 = inlined_call_operand.hbm [shape: f32[1,128], index: 6, kind: output, shape index: {}]
  %s7 = sld [smem:[#allocation0]]
  $region38: #{tpu_custom_call.1} parent=0
    _
  %s9 = ssub.s32 1, %s7
  %s10 = scalar_select 0, %s9, %s7
  $region1: #{tpu_custom_call.1} parent=0
    #allocation2 [shape = 'u8[512]{0}', space=vmem, size = 0x400, scoped, tag = 'output window, operand 0, single buffered']
    #allocation3 [shape = 's32[1]{0}', space=sflag, size = 0x4, scoped, tag = 'scoped memory for tpu_custom_call.1']
    %11 = vsyncpa [#allocation3], 0
    // Predicated region
    $region2: #{tpu_custom_call.1} parent=1 // pred_check
      _
    $region3: #{tpu_custom_call.1} parent=1 // pred_check_branch
      %13 = sbr.rel (0) target = $region5
    $region4: #{tpu_custom_call.1} parent=1 // pred_region
      _
    $region5: #{tpu_custom_call.1} parent=1 // pred_fallthru
      _
    // Predicated region
    $region6: #{tpu_custom_call.1} parent=1 // pred_check
      _
    $region7: #{tpu_custom_call.1} parent=1 // pred_check_branch
      %15 = sbr.rel (0) target = $region9
    $region8: #{tpu_custom_call.1} parent=1 // pred_region
      _
    $region9: #{tpu_custom_call.1} parent=1 // pred_fallthru
      _
    // Predicated region
    $region10: #{tpu_custom_call.1} parent=1 // pred_check
      _
    $region11: #{tpu_custom_call.1} parent=1 // pred_check_branch
      %17 = sbr.rel (0) target = $region13
    $region12: #{tpu_custom_call.1} parent=1 // pred_region
      _
    $region13: #{tpu_custom_call.1} parent=1 // pred_fallthru
      _
    // Predicated region
    $region14: #{tpu_custom_call.1} parent=1 // pred_check
      _
    $region15: #{tpu_custom_call.1} parent=1 // pred_check_branch
      %19 = sbr.rel (0) target = $region17
    $region16: #{tpu_custom_call.1} parent=1 // pred_region
      _
    $region17: #{tpu_custom_call.1} parent=1 // pred_fallthru
      _
    // Predicated region
    $region18: #{tpu_custom_call.1} parent=1 // pred_check
      _
    $region19: #{tpu_custom_call.1} parent=1 // pred_check_branch
      %21 = sbr.rel (0) target = $region21
    $region20: #{tpu_custom_call.1} parent=1 // pred_region
      _
    $region21: #{tpu_custom_call.1} parent=1 // pred_fallthru
      _
    // Predicated region
    $region22: #{tpu_custom_call.1} parent=1 // pred_check
      _
    $region23: #{tpu_custom_call.1} parent=1 // pred_check_branch
      %23 = sbr.rel (0) target = $region25
    $region24: #{tpu_custom_call.1} parent=1 // pred_region
      _
    $region25: #{tpu_custom_call.1} parent=1 // pred_fallthru
      _
    %p24 = scmp.eq.s32.totalorder 0, 0
    // Predicated region
    $region26: #{tpu_custom_call.1} parent=1 // pred_check
      %p25 = pneg %p24
    $region27: #{tpu_custom_call.1} parent=1 // pred_check_branch
      %27 = sbr.rel (%p25) target = $region29
    $region28: #{tpu_custom_call.1} parent=1 // pred_region
      %28 = vst [vmem:[#allocation2] sm:$0x1] 0.0
    $region29: #{tpu_custom_call.1} parent=1 // pred_fallthru
      _
    %v29 = vld [vmem:[%s0] sm:$0x1]
    %v30 = vld [vmem:[%s0 + $0x1] sm:$0x1]
    %v31 = vld [vmem:[%s0 + $0x2] sm:$0x1]
    %v32 = vld [vmem:[%s0 + $0x3] sm:$0x1]
    %v33 = vld [vmem:[%s3] sm:$0xff]
    %35 = vset.pattern.permute.xlu0 2
    %36 = vperm.xlu0 %35, %v33
    %v37 = vpop.permute.xlu0 %36
    %v39 = vlaneseq
    %v40 = vshrl.u32 %v39, 7
    %v41 = vsub.s32 0, %v40
    %v42 = vrot.slane %v31, %v41
    %v43 = vmin.f32 %v37, %v42
    %44 = vset.pattern.permute.xlu0 0
    %45 = vperm.xlu0 %44, %v33
    %v46 = vpop.permute.xlu0 %45
    %v48 = vlaneseq
    %v49 = vshrl.u32 %v48, 7
    %v50 = vsub.s32 0, %v49
    %v51 = vrot.slane %v29, %v50
    %v52 = vmax.f32 %v46, %v51
    %v53 = vsub.f32 %v43, %v52
    %v54 = vmax.f32 %v53, 0.0
    %55 = vset.pattern.permute.xlu0 3
    %56 = vperm.xlu0 %55, %v33
    %v57 = vpop.permute.xlu0 %56
    %v59 = vlaneseq
    %v60 = vshrl.u32 %v59, 7
    %v61 = vsub.s32 0, %v60
    %v62 = vrot.slane %v32, %v61
    %v63 = vmin.f32 %v57, %v62
    %64 = vset.pattern.permute.xlu0 1
    %65 = vperm.xlu0 %64, %v33
    %v66 = vpop.permute.xlu0 %65
    %v68 = vlaneseq
    %v69 = vshrl.u32 %v68, 7
    %v70 = vsub.s32 0, %v69
    %v71 = vrot.slane %v30, %v70
    %v72 = vmax.f32 %v66, %v71
    %v73 = vsub.f32 %v63, %v72
    %v74 = vmax.f32 %v73, 0.0
    %v75 = vmul.f32 %v54, %v74
    %v76 = vld [vmem:[%s1] sm:$0x1]
    %v77 = vld [vmem:[%s4] sm:$0xff]
    %v79 = vlaneseq
    %v80 = vshrl.u32 %v79, 7
    %v81 = vsub.s32 0, %v80
    %v82 = vrot.slane %v76, %v81
    %85 = vset.pattern.permute.xlu0 0
    %86 = vperm.xlu0 %85, %v77
    %v87 = vpop.permute.xlu0 %86
    %v89 = vadd.f32 %v82, %v87
    %v90 = vsub.f32 %v89, %v75
    %v91 = vmul.f32 %v90, 0.5
    %vm92 = vcmp.ge.f32.partialorder %v75, %v91
    %v93 = vld [vmem:[%s2] sm:$0x1]
    %v94 = vld [vmem:[%s5] sm:$0xff]
    %v95 = vlaneseq
    %v96 = vshrl.u32 %v95, 7
    %v97 = vsub.s32 0, %v96
    %v98 = vrot.slane %v93, %v97
    %99 = vset.pattern.permute.xlu0 0
    %100 = vperm.xlu0 %99, %v94
    %v101 = vpop.permute.xlu0 %100
    %vm102 = vcmp.eq.s32.totalorder %v98, %v101
    %vm103 = vmand %vm92, %vm102
    %v104 = vsel %vm103, 1, 0
    %v105 = vcvt.s32.f32 %v104
    %v106 = vrot.slane %v105, 4
    %v107 = vmax.f32 %v105, %v106
    %v108 = vrot.slane %v107, 2
    %v109 = vmax.f32 %v107, %v108
    %v110 = vrot.slane %v109, 1
    %v111 = vmax.f32 %v109, %v110
    %v112 = vld [vmem:[#allocation2] sm:$0x1]
    %v113 = vmax.f32 %v112, %v111
    %114 = vst [vmem:[#allocation2] sm:$0x1] %v113
    // Predicated region
    $region30: #{tpu_custom_call.1} parent=1 // pred_check
      _
    $region31: #{tpu_custom_call.1} parent=1 // pred_check_branch
      %116 = sbr.rel (0) target = $region33
    $region32: #{tpu_custom_call.1} parent=1 // pred_region
      %s118 = ssub.s32 16, 16
      %119 = vsyncadd [#allocation3], %s118
      %s121 = sshll.u32 [#allocation2], 4
      %s122 = int_to_ptr.vmem [resolvable:$true] %s121
      %124 = dma.vmem_to_hbm [thread:$0]  %s122, 16, %s6, [#allocation3]
    $region33: #{tpu_custom_call.1} parent=1 // pred_fallthru
      _
    // Predicated region
    $region34: #{tpu_custom_call.1} parent=1 // pred_check
      _
    $region35: #{tpu_custom_call.1} parent=1 // pred_check_branch
      %126 = sbr.rel (0) target = $region37
    $region36: #{tpu_custom_call.1} parent=1 // pred_region
      %127 = dma.done [#allocation3], 16
    $region37: #{tpu_custom_call.1} parent=1 // pred_fallthru
      _
    %128 = vsyncpa [#allocation3], 1

</llo_original>
